<compile_context>
chip_gen: v7x
topology: tpu7x:2x2x1
jax: 0.10.0
libtpu: 0.0.40
codegen_flags: <defaults>
</compile_context>

<pallas_src>
import jax
import jax.numpy as jnp
from jax.experimental import pallas as pl
from jax.experimental.pallas import tpu as pltpu

HIDDEN = 64


def _round_up(n, m):
    return ((n + m - 1) // m) * m


# ----------------------------------------------------------------------------- #
# Kernel
# ----------------------------------------------------------------------------- #
def policy_mlp_kernel(x_ref, w1_ref, w2_ref, w3_ref, bias_ref, out_ref):
    cdt = w1_ref.dtype                      # compute dtype (bf16)
    H = w1_ref.shape[1]
    A = w3_ref.shape[1]

    # Packed biases (f32 slab, DMA'd once): row 0 -> b1, row 1 -> b2, row 2 -> b3.
    # Hidden-layer biases cast to bf16 (tiny (1, 64) casts) for the bf16 epilogue.
    b1 = bias_ref[0:1, :H].astype(cdt)
    b2 = bias_ref[1:2, :H].astype(cdt)
    b3 = bias_ref[2:3, :A]                  # final-layer bias stays f32

    # In-kernel f32 -> bf16 cast: x streams from HBM once as f32, no wrapper copy.
    x = x_ref[...].astype(cdt)                                     # (TB, D) bf16

    # MXU matmuls with f32 accumulation; hidden epilogues (bias + ReLU) in bf16
    # (ReLU commutes with the downcast), final epilogue in f32.
    acc1 = jnp.dot(x, w1_ref[...], preferred_element_type=jnp.float32)
    h1 = jnp.maximum(acc1.astype(cdt) + b1, 0)                     # (TB, H) bf16
    acc2 = jnp.dot(h1, w2_ref[...], preferred_element_type=jnp.float32)
    h2 = jnp.maximum(acc2.astype(cdt) + b2, 0)                     # (TB, H) bf16
    acc3 = jnp.dot(h2, w3_ref[...], preferred_element_type=jnp.float32)
    out_ref[...] = (acc3 + b3).astype(out_ref.dtype)               # (TB, A) f32


# ----------------------------------------------------------------------------- #
# One-time parameter prep (hoisted out of the per-call path)
# ----------------------------------------------------------------------------- #
def prepare_policy_params(params, compute_dtype=jnp.bfloat16):
    """Cast weights to the MXU compute dtype and pack the three biases into a
    single (3, max(H, A)) f32 slab. Do this once; policy_forward then issues a
    single Pallas dispatch per call."""
    H = params["w1"].shape[1]
    A = params["w3"].shape[1]
    BH = max(H, A)

    def pad_bias(b):
        b = b.reshape(1, -1).astype(jnp.float32)
        return jnp.pad(b, ((0, 0), (0, BH - b.shape[1])))

    return {
        "w1": params["w1"].astype(compute_dtype),
        "w2": params["w2"].astype(compute_dtype),
        "w3": params["w3"].astype(compute_dtype),
        "bias": jnp.concatenate(
            [pad_bias(params["b1"]), pad_bias(params["b2"]), pad_bias(params["b3"])],
            axis=0,
        ),                                                          # (3, BH) f32
    }


# ----------------------------------------------------------------------------- #
# Tile selection
# ----------------------------------------------------------------------------- #
def _choose_batch_tile(B, D, A, block_b, vmem_limit_bytes):
    """Batch tile: multiple of 16 rows (bf16 sublane pack), >= 4 grid steps when
    the batch is big enough (v7x megacore + pipeline overlap), capped so the
    double-buffered f32 x tiles and lane-padded f32 out tiles fit the scoped VMEM
    budget. Falls back to a single full-extent block for tiny batches."""
    if B <= 16:
        return B                                   # full-dim block: always legal

    tb = min(_round_up(block_b, 16), _round_up(B, 16))

    # Keep at least 4 grid steps when possible (megacore sharding + DMA overlap).
    min_steps = 4
    if B >= min_steps * 16:
        tb = min(tb, _round_up(pl.cdiv(B, min_steps), 16))

    # VMEM cap: 2 x (tb, D) f32 input buffers + 2 x (tb, round_up(A,128)) f32
    # output buffers (weights/bias are a few KiB). Leave ~40% headroom.
    per_row_bytes = 2 * D * 4 + 2 * _round_up(A, 128) * 4
    budget = int(vmem_limit_bytes * 0.6)
    tb_cap = max(16, (budget // per_row_bytes) // 16 * 16)
    tb = min(tb, tb_cap)

    if tb >= B:
        return B                                   # single full-extent block
    return max(16, tb)


# ----------------------------------------------------------------------------- #
# Forward
# ----------------------------------------------------------------------------- #
def policy_forward(x, prepared, *, block_b=4096, vmem_limit_bytes=32 * 1024 * 1024):
    """Fused Policy MLP forward as a single batch-tiled Pallas TPU kernel.

    x:        [B, dim_states] float32 (cast to bf16 inside the kernel)
    prepared: output of prepare_policy_params()
    """
    B, D = x.shape
    w1, w2, w3, bias = prepared["w1"], prepared["w2"], prepared["w3"], prepared["bias"]
    H = w1.shape[1]
    A = w3.shape[1]
    BH = bias.shape[1]
    assert w1.shape[0] == D, "dim_states mismatch between x and params"

    tb = _choose_batch_tile(B, D, A, block_b, vmem_limit_bytes)
    grid = (pl.cdiv(B, tb),)        # ragged tail handled by Pallas partial block

    return pl.pallas_call(
        policy_mlp_kernel,
        out_shape=jax.ShapeDtypeStruct((B, A), jnp.float32),
        grid=grid,
        in_specs=[
            # Streamed batch tiles (auto double-buffered across grid steps).
            pl.BlockSpec((tb, D), lambda i: (i, 0)),
            # VMEM-resident operands: constant block index => fetched once.
            pl.BlockSpec((D, H), lambda i: (0, 0)),
            pl.BlockSpec((H, H), lambda i: (0, 0)),
            pl.BlockSpec((H, A), lambda i: (0, 0)),
            pl.BlockSpec((3, BH), lambda i: (0, 0)),
        ],
        out_specs=pl.BlockSpec((tb, A), lambda i: (i, 0)),
        compiler_params=pltpu.CompilerParams(
            dimension_semantics=("parallel",),   # v7x: shard batch over both TCs
            vmem_limit_bytes=vmem_limit_bytes,   # explicit, portable across v5e/v6e/v7x
        ),
    )(x, w1, w2, w3, bias)


# ----------------------------------------------------------------------------- #
# Init (mirrors nn.Linear defaults)
# ----------------------------------------------------------------------------- #
def init_policy_params(key, dim_states, dim_actions, continuous_control=True):
    ks = jax.random.split(key, 6)

    def linear(kw, kb, fan_in, fan_out):
        bound = 1.0 / jnp.sqrt(fan_in)
        w = jax.random.uniform(kw, (fan_in, fan_out), jnp.float32, -bound, bound)
        b = jax.random.uniform(kb, (1, fan_out), jnp.float32, -bound, bound)
        return w, b

    w1, b1 = linear(ks[0], ks[1], dim_states, HIDDEN)
    w2, b2 = linear(ks[2], ks[3], HIDDEN, HIDDEN)
    w3, b3 = linear(ks[4], ks[5], HIDDEN, dim_actions)
    params = {"w1": w1, "b1": b1, "w2": w2, "b2": b2, "w3": w3, "b3": b3}
    if continuous_control:
        # Parameter exists in the module but is NOT used in forward(); kept for parity.
        params["log_std"] = jnp.zeros((dim_actions,), jnp.float32)
    return params


if __name__ == "__main__":
    key = jax.random.PRNGKey(0)
    k_param, k_x1, k_x2 = jax.random.split(key, 3)

    dim_states, dim_actions = 32, 4
    params = init_policy_params(k_param, dim_states, dim_actions, continuous_control=True)
    prepared = prepare_policy_params(params)      # one-time weight cast + bias pack

    def reference(x):
        h1 = jnp.maximum(x @ params["w1"] + params["b1"], 0.0)
        h2 = jnp.maximum(h1 @ params["w2"] + params["b2"], 0.0)
        return h2 @ params["w3"] + params["b3"]

    # Small batch (single full-extent block).
    x_small = jax.random.normal(k_x1, (8, dim_states), jnp.float32)
    out_small = jax.block_until_ready(policy_forward(x_small, prepared))
    assert out_small.shape == (8, dim_actions)
    assert jnp.allclose(out_small, reference(x_small), atol=5e-2, rtol=5e-2)

    # Larger batch exercising multi-step grid with a ragged (partial) last block.
    x_big = jax.random.normal(k_x2, (600, dim_states), jnp.float32)
    out_big = jax.block_until_ready(policy_forward(x_big, prepared))
    assert out_big.shape == (600, dim_actions)
    assert jnp.allclose(out_big, reference(x_big), atol=5e-2, rtol=5e-2)

    print("KERNEL_OK")
</pallas_src>

<mosaic_0001>
module attributes {stable_mosaic.version = 11 : i64} {
  func.func @policy_mlp_kernel(%arg0: i32, %arg1: memref<8x32xf32, #tpu.memory_space<vmem>>, %arg2: memref<32x64xbf16, #tpu.memory_space<vmem>>, %arg3: memref<64x64xbf16, #tpu.memory_space<vmem>>, %arg4: memref<64x4xbf16, #tpu.memory_space<vmem>>, %arg5: memref<3x64xf32, #tpu.memory_space<vmem>>, %arg6: memref<8x4xf32, #tpu.memory_space<vmem>>) attributes {dimension_semantics = [#tpu.dimension_semantics<parallel>], iteration_bounds = array<i64: 1>, scalar_prefetch = 0 : i64, scratch_operands = 0 : i64, tpu.core_type = #tpu.core_type<tc>, window_params = [{transform_indices = @transform_0, window_bounds = array<i64: 8, 32>}, {pipeline_mode = #tpu.pipeline_mode<synchronous>, transform_indices = @transform_1, window_bounds = array<i64: 32, 64>}, {pipeline_mode = #tpu.pipeline_mode<synchronous>, transform_indices = @transform_2, window_bounds = array<i64: 64, 64>}, {pipeline_mode = #tpu.pipeline_mode<synchronous>, transform_indices = @transform_3, window_bounds = array<i64: 64, 4>}, {pipeline_mode = #tpu.pipeline_mode<synchronous>, transform_indices = @transform_4, window_bounds = array<i64: 3, 64>}, {transform_indices = @transform_5, window_bounds = array<i64: 8, 4>}]} {
    %c0 = arith.constant 0 : index
    %c0_0 = arith.constant 0 : index
    %0 = vector.load %arg5[%c0, %c0_0] : memref<3x64xf32, #tpu.memory_space<vmem>>, vector<1x64xf32>
    %1 = arith.truncf %0 : vector<1x64xf32> to vector<1x64xbf16>
    %c1 = arith.constant 1 : index
    %c0_1 = arith.constant 0 : index
    %2 = vector.load %arg5[%c1, %c0_1] : memref<3x64xf32, #tpu.memory_space<vmem>>, vector<1x64xf32>
    %3 = arith.truncf %2 : vector<1x64xf32> to vector<1x64xbf16>
    %c2 = arith.constant 2 : index
    %c0_2 = arith.constant 0 : index
    %4 = vector.load %arg5[%c2, %c0_2] : memref<3x64xf32, #tpu.memory_space<vmem>>, vector<1x4xf32>
    %c0_3 = arith.constant 0 : index
    %c0_4 = arith.constant 0 : index
    %5 = vector.load %arg1[%c0_3, %c0_4] : memref<8x32xf32, #tpu.memory_space<vmem>>, vector<8x32xf32>
    %6 = arith.truncf %5 : vector<8x32xf32> to vector<8x32xbf16>
    %c0_5 = arith.constant 0 : index
    %c0_6 = arith.constant 0 : index
    %7 = vector.load %arg2[%c0_5, %c0_6] : memref<32x64xbf16, #tpu.memory_space<vmem>>, vector<32x64xbf16>
    %cst = arith.constant dense<0.000000e+00> : vector<8x64xf32>
    %8 = tpu.matmul %6, %7, %cst {dimension_numbers = #tpu.dot_dimension_numbers<[1], [0], [0], [1], [0, 0, 1, 1], [], []>} : vector<8x32xbf16>, vector<32x64xbf16>, vector<8x64xf32> -> vector<8x64xf32>
    %9 = arith.truncf %8 : vector<8x64xf32> to vector<8x64xbf16>
    %10 = vector.broadcast %1 : vector<1x64xbf16> to vector<8x64xbf16>
    %11 = arith.addf %9, %10 : vector<8x64xbf16>
    %cst_7 = arith.constant 0.000000e+00 : bf16
    %12 = vector.broadcast %cst_7 : bf16 to vector<8x64xbf16>
    %13 = arith.maximumf %11, %12 : vector<8x64xbf16>
    %c0_8 = arith.constant 0 : index
    %c0_9 = arith.constant 0 : index
    %14 = vector.load %arg3[%c0_8, %c0_9] : memref<64x64xbf16, #tpu.memory_space<vmem>>, vector<64x64xbf16>
    %cst_10 = arith.constant dense<0.000000e+00> : vector<8x64xf32>
    %15 = tpu.matmul %13, %14, %cst_10 {dimension_numbers = #tpu.dot_dimension_numbers<[1], [0], [0], [1], [0, 0, 1, 1], [], []>} : vector<8x64xbf16>, vector<64x64xbf16>, vector<8x64xf32> -> vector<8x64xf32>
    %16 = arith.truncf %15 : vector<8x64xf32> to vector<8x64xbf16>
    %17 = vector.broadcast %3 : vector<1x64xbf16> to vector<8x64xbf16>
    %18 = arith.addf %16, %17 : vector<8x64xbf16>
    %cst_11 = arith.constant 0.000000e+00 : bf16
    %19 = vector.broadcast %cst_11 : bf16 to vector<8x64xbf16>
    %20 = arith.maximumf %18, %19 : vector<8x64xbf16>
    %c0_12 = arith.constant 0 : index
    %c0_13 = arith.constant 0 : index
    %21 = vector.load %arg4[%c0_12, %c0_13] : memref<64x4xbf16, #tpu.memory_space<vmem>>, vector<64x4xbf16>
    %cst_14 = arith.constant dense<0.000000e+00> : vector<8x4xf32>
    %22 = tpu.matmul %20, %21, %cst_14 {dimension_numbers = #tpu.dot_dimension_numbers<[1], [0], [0], [1], [0, 0, 1, 1], [], []>} : vector<8x64xbf16>, vector<64x4xbf16>, vector<8x4xf32> -> vector<8x4xf32>
    %23 = vector.broadcast %4 : vector<1x4xf32> to vector<8x4xf32>
    %24 = arith.addf %22, %23 : vector<8x4xf32>
    %c0_15 = arith.constant 0 : index
    %c0_16 = arith.constant 0 : index
    %25 = vector.load %arg6[%c0_15, %c0_16] : memref<8x4xf32, #tpu.memory_space<vmem>>, vector<8x4xf32>
    tpu.vector_store %arg6[%c0_15, %c0_16], %24 {strides = array<i32>} : memref<8x4xf32, #tpu.memory_space<vmem>>, vector<8x4xf32>,
    return
  }
  func.func @transform_0(%arg0: i32) -> (i32, i32) {
    %c0_i32 = arith.constant 0 : i32
    %c0_i32_0 = arith.constant 0 : i32
    return %arg0, %c0_i32 : i32, i32
  }
  func.func @transform_1(%arg0: i32) -> (i32, i32) {
    %c0_i32 = arith.constant 0 : i32
    %c0_i32_0 = arith.constant 0 : i32
    %c0_i32_1 = arith.constant 0 : i32
    return %c0_i32, %c0_i32_0 : i32, i32
  }
  func.func @transform_2(%arg0: i32) -> (i32, i32) {
    %c0_i32 = arith.constant 0 : i32
    %c0_i32_0 = arith.constant 0 : i32
    %c0_i32_1 = arith.constant 0 : i32
    return %c0_i32, %c0_i32_0 : i32, i32
  }
  func.func @transform_3(%arg0: i32) -> (i32, i32) {
    %c0_i32 = arith.constant 0 : i32
    %c0_i32_0 = arith.constant 0 : i32
    %c0_i32_1 = arith.constant 0 : i32
    return %c0_i32, %c0_i32_0 : i32, i32
  }
  func.func @transform_4(%arg0: i32) -> (i32, i32) {
    %c0_i32 = arith.constant 0 : i32
    %c0_i32_0 = arith.constant 0 : i32
    %c0_i32_1 = arith.constant 0 : i32
    return %c0_i32, %c0_i32_0 : i32, i32
  }
  func.func @transform_5(%arg0: i32) -> (i32, i32) {
    %c0_i32 = arith.constant 0 : i32
    %c0_i32_0 = arith.constant 0 : i32
    return %arg0, %c0_i32 : i32, i32
  }
}

</mosaic_0001>

<llo_original>
// kernel: tpu_custom_call.1
$region0: #{tpu_custom_call.1}
  #allocation0 [shape = 'u32[]', space=smem, size = 0x4, offset = 0x4, fixed_abs, tag = 'smem constant byte address 0x4 - core index']
  #allocation1 [shape = 'u32[144,128]{1,0:T(1,128)}', space=vmem, size = 0x12000, scoped, tag = 'internal scratch']
  %s0 = inlined_call_operand.vmem [shape: f32[8,32], index: 0, kind: input, shape index: {}]
  %s1 = inlined_call_operand.hbm [shape: bf16[32,64], index: 1, kind: input, shape index: {}]
  %s2 = inlined_call_operand.vmem [shape: bf16[64,64], index: 2, kind: input, shape index: {}]
  %s3 = inlined_call_operand.vmem [shape: bf16[64,4], index: 3, kind: input, shape index: {}]
  %s4 = inlined_call_operand.vmem [shape: f32[3,64], index: 4, kind: input, shape index: {}]
  %s5 = inlined_call_operand.vmem [shape: f32[8,4], index: 5, kind: output, shape index: {}]
  %s6 = sld [smem:[#allocation0]]
  $region34: #{tpu_custom_call.1} parent=0
    _
  %s8 = ssub.s32 1, %s6
  %s9 = scalar_select 0, %s8, %s6
  $region1: #{tpu_custom_call.1} parent=0
    #allocation2 [shape = 'u8[8192]{0}', space=vmem, size = 0x2000, scoped, tag = 'input window, operand 1, single buffered']
    #allocation3 [shape = 's32[1]{0}', space=sflag, size = 0x4, scoped, tag = 'scoped memory for tpu_custom_call.1']
    %10 = vsyncpa [#allocation3], 0
    // Predicated region
    $region2: #{tpu_custom_call.1} parent=1 // pred_check
      _
    $region3: #{tpu_custom_call.1} parent=1 // pred_check_branch
      %12 = sbr.rel (0) target = $region5
    $region4: #{tpu_custom_call.1} parent=1 // pred_region
      _
    $region5: #{tpu_custom_call.1} parent=1 // pred_fallthru
      _
    // Predicated region
    $region6: #{tpu_custom_call.1} parent=1 // pred_check
      _
    $region7: #{tpu_custom_call.1} parent=1 // pred_check_branch
      %14 = sbr.rel (0) target = $region9
    $region8: #{tpu_custom_call.1} parent=1 // pred_region
      %s16 = ssub.s32 256, 256
      %17 = vsyncadd [#allocation3], %s16
      %s18 = sshll.u32 [#allocation2], 4
      %s19 = int_to_ptr.vmem [resolvable:$true] %s18
      %24 = dma.hbm_to_vmem [thread:$0]  %s1, 256, %s19, [#allocation3], 64, 64, 4
    $region9: #{tpu_custom_call.1} parent=1 // pred_fallthru
      _
    // Predicated region
    $region10: #{tpu_custom_call.1} parent=1 // pred_check
      _
    $region11: #{tpu_custom_call.1} parent=1 // pred_check_branch
      %26 = sbr.rel (0) target = $region13
    $region12: #{tpu_custom_call.1} parent=1 // pred_region
      _
    $region13: #{tpu_custom_call.1} parent=1 // pred_fallthru
      _
    // Predicated region
    $region14: #{tpu_custom_call.1} parent=1 // pred_check
      _
    $region15: #{tpu_custom_call.1} parent=1 // pred_check_branch
      %28 = sbr.rel (0) target = $region17
    $region16: #{tpu_custom_call.1} parent=1 // pred_region
      _
    $region17: #{tpu_custom_call.1} parent=1 // pred_fallthru
      _
    // Predicated region
    $region18: #{tpu_custom_call.1} parent=1 // pred_check
      _
    $region19: #{tpu_custom_call.1} parent=1 // pred_check_branch
      %30 = sbr.rel (0) target = $region21
    $region20: #{tpu_custom_call.1} parent=1 // pred_region
      _
    $region21: #{tpu_custom_call.1} parent=1 // pred_fallthru
      _
    // Predicated region
    $region22: #{tpu_custom_call.1} parent=1 // pred_check
      _
    $region23: #{tpu_custom_call.1} parent=1 // pred_check_branch
      %32 = sbr.rel (0) target = $region25
    $region24: #{tpu_custom_call.1} parent=1 // pred_region
      %33 = dma.done [#allocation3], 256
    $region25: #{tpu_custom_call.1} parent=1 // pred_fallthru
      _
    %v35 = vld [vmem:[%s4] sm:$0x1]
    %v36 = vpack.c.bf16 %v35, %v35
    %v37 = vld [vmem:[%s4 + $0x1] sm:$0x1]
    %v38 = vpack.c.bf16 %v37, %v37
    %v39 = vld [vmem:[%s4 + $0x2] sm:$0x1]
    %v40 = vld [vmem:[%s0] sm:$0xff]
    %v41 = vpack.c.bf16 %v40, %v40
    %v42 = vld [vmem:[#allocation2] sm:$0xf]
    %v43 = vld [vmem:[#allocation2 + $0x4] sm:$0xf]
    %v44 = vld [vmem:[#allocation2 + $0x8] sm:$0xf]
    %v45 = vld [vmem:[#allocation2 + $0xc] sm:$0xf]
    %v50 = vunpack.c.l.b16 %v42
    %v51 = vunpack.c.l.b16 %v43
    %v52 = vunpack.c.l.b16 %v44
    %v53 = vunpack.c.l.b16 %v45
    %v54 = vpack.c.b16 %v51, %v50
    %v55 = vpack.c.b16 %v53, %v52
    %vm58 = vcmask 261120
    %v60 = vsel %vm58, %v41, 0
    %62 = vmatprep.subr.bf16.mxu0 0
    %63 = vmatpush1.bf16.msra.mxu0 %v54
    %64 = vmatprep.subr.bf16.mxu0 0
    %65 = vmatpush1.bf16.msra.mxu0 %v55
    %66 = vmatprep.subr.bf16.mxu0 0
    %67 = vmatpush1.bf16.msra.mxu0 0
    %68 = vmatprep.subr.bf16.mxu0 0
    %69 = vmatpush1.bf16.msra.mxu0 0
    %70 = vmatprep.subr.bf16.mxu0 0
    %71 = vmatpush1.bf16.msra.mxu0 0
    %72 = vmatprep.subr.bf16.mxu0 0
    %73 = vmatpush1.bf16.msra.mxu0 0
    %74 = vmatprep.subr.bf16.mxu0 0
    %75 = vmatpush1.bf16.msra.mxu0 0
    %76 = vmatprep.subr.bf16.mxu0 0
    %77 = vmatpush1.bf16.msra.mxu0 0
    %78 = vmatprep.subr.bf16.mxu0 0
    %79 = vmatpush1.bf16.msra.mxu0 0
    %80 = vmatprep.subr.bf16.mxu0 0
    %81 = vmatpush1.bf16.msra.mxu0 0
    %82 = vmatprep.subr.bf16.mxu0 0
    %83 = vmatpush1.bf16.msra.mxu0 0
    %84 = vmatprep.subr.bf16.mxu0 0
    %85 = vmatpush1.bf16.msra.mxu0 0
    %86 = vmatprep.subr.bf16.mxu0 0
    %87 = vmatpush1.bf16.msra.mxu0 0
    %88 = vmatprep.subr.bf16.mxu0 0
    %89 = vmatpush1.bf16.msra.mxu0 0
    %90 = vmatprep.subr.bf16.mxu0 0
    %91 = vmatpush1.bf16.msra.mxu0 0
    %92 = vmatprep.subr.bf16.mxu0 0
    %93 = vmatpush1.bf16.msra.mxu0 0
    %94 = vmatprep.mubr.bf16.mxu0 0
    %95 = vmatmul.mubr.bf16.gmra.mrb[0].mxu0 %v60
    %v96 = vpop.f32.mrb[0].mxu0
    %v97 = vadd.f32 0.0, %v96
    %v98 = vpop.f32.mrb[0].mxu0
    %v99 = vpop.f32.mrb[0].mxu0
    %v100 = vpop.f32.mrb[0].mxu0
    %101 = vdwg.mxu0
    %v102 = vpack.c.bf16 %v97, %v97
    %v104 = vpack.i.b16 %v36, %v36
    %v106 = vlaneseq
    %v107 = vshrl.u32 %v106, 7
    %v108 = vsub.s32 0, %v107
    %v109 = vrot.slane %v104, %v108
    %v110 = vadd.bf16 %v102, %v109
    %v111 = vmax.bf16 %v110, 0
    %v112 = vld [vmem:[%s2] sm:$0xf]
    %v113 = vld [vmem:[%s2 + $0x4] sm:$0xf]
    %v114 = vld [vmem:[%s2 + $0x8] sm:$0xf]
    %v115 = vld [vmem:[%s2 + $0xc] sm:$0xf]
    %v116 = vld [vmem:[%s2 + $0x10] sm:$0xf]
    %v117 = vld [vmem:[%s2 + $0x14] sm:$0xf]
    %v118 = vld [vmem:[%s2 + $0x18] sm:$0xf]
    %v119 = vld [vmem:[%s2 + $0x1c] sm:$0xf]
    %v128 = vunpack.c.l.b16 %v112
    %v129 = vunpack.c.l.b16 %v113
    %v130 = vunpack.c.l.b16 %v114
    %v131 = vunpack.c.l.b16 %v115
    %v132 = vunpack.c.l.b16 %v116
    %v133 = vunpack.c.l.b16 %v117
    %v134 = vunpack.c.l.b16 %v118
    %v135 = vunpack.c.l.b16 %v119
    %v136 = vpack.c.b16 %v129, %v128
    %v137 = vpack.c.b16 %v131, %v130
    %v138 = vpack.c.b16 %v133, %v132
    %v139 = vpack.c.b16 %v135, %v134
    %vm144 = vcmask 523264
    %v146 = vsel %vm144, %v111, 0
    %148 = vmatprep.subr.bf16.mxu0 0
    %149 = vmatpush1.bf16.msra.mxu0 %v136
    %150 = vmatprep.subr.bf16.mxu0 0
    %151 = vmatpush1.bf16.msra.mxu0 %v137
    %152 = vmatprep.subr.bf16.mxu0 0
    %153 = vmatpush1.bf16.msra.mxu0 %v138
    %154 = vmatprep.subr.bf16.mxu0 0
    %155 = vmatpush1.bf16.msra.mxu0 %v139
    %156 = vmatprep.subr.bf16.mxu0 0
    %157 = vmatpush1.bf16.msra.mxu0 0
    %158 = vmatprep.subr.bf16.mxu0 0
    %159 = vmatpush1.bf16.msra.mxu0 0
    %160 = vmatprep.subr.bf16.mxu0 0
    %161 = vmatpush1.bf16.msra.mxu0 0
    %162 = vmatprep.subr.bf16.mxu0 0
    %163 = vmatpush1.bf16.msra.mxu0 0
    %164 = vmatprep.subr.bf16.mxu0 0
    %165 = vmatpush1.bf16.msra.mxu0 0
    %166 = vmatprep.subr.bf16.mxu0 0
    %167 = vmatpush1.bf16.msra.mxu0 0
    %168 = vmatprep.subr.bf16.mxu0 0
    %169 = vmatpush1.bf16.msra.mxu0 0
    %170 = vmatprep.subr.bf16.mxu0 0
    %171 = vmatpush1.bf16.msra.mxu0 0
    %172 = vmatprep.subr.bf16.mxu0 0
    %173 = vmatpush1.bf16.msra.mxu0 0
    %174 = vmatprep.subr.bf16.mxu0 0
    %175 = vmatpush1.bf16.msra.mxu0 0
    %176 = vmatprep.subr.bf16.mxu0 0
    %177 = vmatpush1.bf16.msra.mxu0 0
    %178 = vmatprep.subr.bf16.mxu0 0
    %179 = vmatpush1.bf16.msra.mxu0 0
    %180 = vmatprep.mubr.bf16.mxu0 0
    %181 = vmatmul.mubr.bf16.gmra.mrb[0].mxu0 %v146
    %v182 = vpop.f32.mrb[0].mxu0
    %v183 = vadd.f32 0.0, %v182
    %v184 = vpop.f32.mrb[0].mxu0
    %v185 = vpop.f32.mrb[0].mxu0
    %v186 = vpop.f32.mrb[0].mxu0
    %187 = vdwg.mxu0
    %v188 = vpack.c.bf16 %v183, %v183
    %v190 = vpack.i.b16 %v38, %v38
    %v192 = vlaneseq
    %v193 = vshrl.u32 %v192, 7
    %v194 = vsub.s32 0, %v193
    %v195 = vrot.slane %v190, %v194
    %v196 = vadd.bf16 %v188, %v195
    %v197 = vmax.bf16 %v196, 0
    %v198 = vld [vmem:[%s3] sm:$0xf]
    %v199 = vld [vmem:[%s3 + $0x4] sm:$0xf]
    %v200 = vld [vmem:[%s3 + $0x8] sm:$0xf]
    %v201 = vld [vmem:[%s3 + $0xc] sm:$0xf]
    %v202 = vld [vmem:[%s3 + $0x10] sm:$0xf]
    %v203 = vld [vmem:[%s3 + $0x14] sm:$0xf]
    %v204 = vld [vmem:[%s3 + $0x18] sm:$0xf]
    %v205 = vld [vmem:[%s3 + $0x1c] sm:$0xf]
    %v206 = vlaneseq
    %v207 = vshrl.u32 %v206, 7
    %v208 = vsub.s32 0, %v207
    %v209 = vrot.slane %v39, %v208
    %v218 = vunpack.c.l.b16 %v198
    %v219 = vunpack.c.l.b16 %v199
    %v220 = vunpack.c.l.b16 %v200
    %v221 = vunpack.c.l.b16 %v201
    %v222 = vunpack.c.l.b16 %v202
    %v223 = vunpack.c.l.b16 %v203
    %v224 = vunpack.c.l.b16 %v204
    %v225 = vunpack.c.l.b16 %v205
    %v226 = vpack.c.b16 %v219, %v218
    %v227 = vpack.c.b16 %v221, %v220
    %v228 = vpack.c.b16 %v223, %v222
    %v229 = vpack.c.b16 %v225, %v224
    %v235 = vsel %vm144, %v197, 0
    %237 = vmatprep.subr.bf16.mxu0 0
    %238 = vmatpush1.bf16.msra.mxu0 %v226
    %239 = vmatprep.subr.bf16.mxu0 0
    %240 = vmatpush1.bf16.msra.mxu0 %v227
    %241 = vmatprep.subr.bf16.mxu0 0
    %242 = vmatpush1.bf16.msra.mxu0 %v228
    %243 = vmatprep.subr.bf16.mxu0 0
    %244 = vmatpush1.bf16.msra.mxu0 %v229
    %245 = vmatprep.subr.bf16.mxu0 0
    %246 = vmatpush1.bf16.msra.mxu0 0
    %247 = vmatprep.subr.bf16.mxu0 0
    %248 = vmatpush1.bf16.msra.mxu0 0
    %249 = vmatprep.subr.bf16.mxu0 0
    %250 = vmatpush1.bf16.msra.mxu0 0
    %251 = vmatprep.subr.bf16.mxu0 0
    %252 = vmatpush1.bf16.msra.mxu0 0
    %253 = vmatprep.subr.bf16.mxu0 0
    %254 = vmatpush1.bf16.msra.mxu0 0
    %255 = vmatprep.subr.bf16.mxu0 0
    %256 = vmatpush1.bf16.msra.mxu0 0
    %257 = vmatprep.subr.bf16.mxu0 0
    %258 = vmatpush1.bf16.msra.mxu0 0
    %259 = vmatprep.subr.bf16.mxu0 0
    %260 = vmatpush1.bf16.msra.mxu0 0
    %261 = vmatprep.subr.bf16.mxu0 0
    %262 = vmatpush1.bf16.msra.mxu0 0
    %263 = vmatprep.subr.bf16.mxu0 0
    %264 = vmatpush1.bf16.msra.mxu0 0
    %265 = vmatprep.subr.bf16.mxu0 0
    %266 = vmatpush1.bf16.msra.mxu0 0
    %267 = vmatprep.subr.bf16.mxu0 0
    %268 = vmatpush1.bf16.msra.mxu0 0
    %269 = vmatprep.mubr.bf16.mxu0 0
    %270 = vmatmul.mubr.bf16.gmra.mrb[0].mxu0 %v235
    %v271 = vpop.f32.mrb[0].mxu0
    %v272 = vadd.f32 %v209, %v271
    %v273 = vpop.f32.mrb[0].mxu0
    %v274 = vpop.f32.mrb[0].mxu0
    %v275 = vpop.f32.mrb[0].mxu0
    %276 = vdwg.mxu0
    %vm277 = vcmask 31744
    %278 = vst.msk [vmem:[%s5] sm:$0xff] %vm277, %v272
    // Predicated region
    $region26: #{tpu_custom_call.1} parent=1 // pred_check
      _
    $region27: #{tpu_custom_call.1} parent=1 // pred_check_branch
      %280 = sbr.rel (0) target = $region29
    $region28: #{tpu_custom_call.1} parent=1 // pred_region
      _
    $region29: #{tpu_custom_call.1} parent=1 // pred_fallthru
      _
    // Predicated region
    $region30: #{tpu_custom_call.1} parent=1 // pred_check
      _
    $region31: #{tpu_custom_call.1} parent=1 // pred_check_branch
      %282 = sbr.rel (0) target = $region33
    $region32: #{tpu_custom_call.1} parent=1 // pred_region
      _
    $region33: #{tpu_custom_call.1} parent=1 // pred_fallthru
      _
    %283 = vsyncpa [#allocation3], 1

</llo_original>
